<compile_context>
chip_gen: v5e
topology: v5e:2x2
jax: 0.10.0
libtpu: 0.0.40
codegen_flags: <defaults>
</compile_context>

<pallas_src>
import jax
import jax.numpy as jnp
from jax import lax
from jax.experimental import pallas as pl
from jax.experimental.pallas import tpu as pltpu

WIDTH = 256  # self.width in the PyTorch module


def _round_up(a, m):
    return (a + m - 1) // m * m


def _make_kernel(n_layers, unroll):
    """Builds the fused kernel; n_layers/unroll are trace-time constants."""

    def kernel(x_ref, w_in_ref, b_in_ref, w_hid_ref, b_hid_ref,
               w_out_ref, b_out_ref, o_ref, h_ref):
        # Input layer: h = relu(x @ W_in + b_in)   (f32 accumulate, f32 h)
        acc = jnp.dot(x_ref[...], w_in_ref[...],
                      preferred_element_type=jnp.float32)
        h_ref[...] = jnp.maximum(acc + b_in_ref[...], 0.0)

        # Hidden layers: weights fully VMEM-resident, loop inside the kernel.
        if n_layers > 0:
            def body(l, carry):
                w = w_hid_ref[l]                       # (WIDTH, WIDTH) bf16
                b = b_hid_ref[l]                       # (1, WIDTH)     f32
                acc = jnp.dot(h_ref[...].astype(jnp.bfloat16), w,
                              preferred_element_type=jnp.float32)
                h_ref[...] = jnp.maximum(acc + b, 0.0)
                return carry

            lax.fori_loop(0, n_layers, body, 0, unroll=unroll)

        # Classifier: sigmoid(h @ W_out + b_out)
        logits = jnp.dot(h_ref[...].astype(jnp.bfloat16), w_out_ref[...],
                         preferred_element_type=jnp.float32) + b_out_ref[...]
        o_ref[...] = jax.nn.sigmoid(logits)

    return kernel


def deepnn_forward(x, params, *, block_m=512):
    """x: [B, num_input] float32. params: dict of f32 weights (see init_params)."""
    B, num_input = x.shape
    num_output = params["w_out"].shape[1]
    num_hidden = params["w_hid"].shape[0]

    # Lane-dense feature padding (unmasked loads/stores, dense MXU K/N).
    k_pad = _round_up(num_input, 128)
    n_pad = _round_up(num_output, 128)

    # Batch tile: as big as block_m allows; prefer >= 2 tiles so both v7x
    # TensorCores get work on the "parallel" batch axis when B is large enough.
    tm = min(block_m, _round_up(B, 8))
    if B >= 16 and _round_up(B, tm) // tm < 2:
        tm = _round_up(pl.cdiv(B, 2), 8)

    # Resident-footprint / VMEM-budget check (inputs+outputs double-buffered).
    n_l = max(num_hidden, 1)

    def _block_bytes(tm_):
        return (tm_ * k_pad * 2            # x tile (bf16)
                + k_pad * WIDTH * 2        # w_in  (bf16)
                + WIDTH * 4                # b_in  (f32)
                + n_l * WIDTH * WIDTH * 2  # w_hid (bf16, all layers resident)
                + n_l * 8 * WIDTH * 4      # b_hid (f32, sublane-padded)
                + WIDTH * n_pad * 2        # w_out (bf16)
                + n_pad * 4                # b_out (f32)
                + tm_ * n_pad * 4)         # out tile (f32)

    budget = 40 << 20  # conservative vs. v7x's 64 MiB physical VMEM
    while tm > 8 and 2 * _block_bytes(tm) + tm * WIDTH * 4 > budget:
        tm = max(8, _round_up(tm // 2, 8))

    b_pad = _round_up(B, tm)
    grid = (b_pad // tm,)

    # ---- Pack / pad operands -------------------------------------------------
    xp = jnp.zeros((b_pad, k_pad), jnp.bfloat16)
    xp = xp.at[:B, :num_input].set(x.astype(jnp.bfloat16))

    w_in = jnp.zeros((k_pad, WIDTH), jnp.bfloat16)
    w_in = w_in.at[:num_input, :].set(params["w_in"].astype(jnp.bfloat16))
    b_in = params["b_in"].astype(jnp.float32)                      # (1, WIDTH)

    if num_hidden == 0:
        # Dummy (never read: the in-kernel layer loop has trip count 0).
        w_hid = jnp.zeros((1, WIDTH, WIDTH), jnp.bfloat16)
        b_hid = jnp.zeros((1, 1, WIDTH), jnp.float32)
    else:
        w_hid = params["w_hid"].astype(jnp.bfloat16)                # (L, W, W)
        b_hid = params["b_hid"].astype(jnp.float32)                 # (L, 1, W)

    w_out = jnp.zeros((WIDTH, n_pad), jnp.bfloat16)
    w_out = w_out.at[:, :num_output].set(params["w_out"].astype(jnp.bfloat16))
    b_out = jnp.zeros((1, n_pad), jnp.float32)
    b_out = b_out.at[:, :num_output].set(params["b_out"].astype(jnp.float32))

    # ---- Cost estimate (advisory) -------------------------------------------
    flops = 2 * b_pad * (k_pad * WIDTH + num_hidden * WIDTH * WIDTH
                         + WIDTH * n_pad)
    bytes_accessed = (xp.size * 2 + w_in.size * 2 + w_hid.size * 2
                      + w_out.size * 2 + b_in.size * 4 + b_hid.size * 4
                      + b_out.size * 4 + b_pad * n_pad * 4)
    cost = pl.CostEstimate(flops=int(flops),
                           transcendentals=int(b_pad * n_pad),
                           bytes_accessed=int(bytes_accessed))

    vmem_limit = int(min(2 * _block_bytes(tm) + tm * WIDTH * 4 + (4 << 20),
                         48 << 20))

    kernel = _make_kernel(n_layers=num_hidden,
                          unroll=True if num_hidden <= 16 else 8)

    out_padded = pl.pallas_call(
        kernel,
        out_shape=jax.ShapeDtypeStruct((b_pad, n_pad), jnp.float32),
        grid_spec=pltpu.PrefetchScalarGridSpec(
            num_scalar_prefetch=0,
            grid=grid,
            in_specs=[
                # x tile: one block per batch tile.
                pl.BlockSpec((tm, k_pad), lambda i: (i, 0)),
                # All weights/biases: full arrays, resident (constant index).
                pl.BlockSpec((k_pad, WIDTH), lambda i: (0, 0)),
                pl.BlockSpec((1, WIDTH), lambda i: (0, 0)),
                pl.BlockSpec((w_hid.shape[0], WIDTH, WIDTH),
                             lambda i: (0, 0, 0)),
                pl.BlockSpec((b_hid.shape[0], 1, WIDTH),
                             lambda i: (0, 0, 0)),
                pl.BlockSpec((WIDTH, n_pad), lambda i: (0, 0)),
                pl.BlockSpec((1, n_pad), lambda i: (0, 0)),
            ],
            out_specs=pl.BlockSpec((tm, n_pad), lambda i: (i, 0)),
            # f32 activation scratch, carried across the in-kernel layer loop.
            scratch_shapes=[pltpu.VMEM((tm, WIDTH), jnp.float32)],
        ),
        compiler_params=pltpu.CompilerParams(
            dimension_semantics=("parallel",),
            vmem_limit_bytes=vmem_limit,
        ),
        cost_estimate=cost,
    )(xp, w_in, b_in, w_hid, b_hid, w_out, b_out)

    return out_padded[:B, :num_output]


def init_params(key, num_layers, num_input, num_output):
    ks = jax.random.split(key, 6)
    scale = 0.05
    return {
        "w_in": scale * jax.random.normal(ks[0], (num_input, WIDTH), jnp.float32),
        "b_in": scale * jax.random.normal(ks[1], (1, WIDTH), jnp.float32),
        "w_hid": scale * jax.random.normal(
            ks[2], (num_layers, WIDTH, WIDTH), jnp.float32),
        "b_hid": scale * jax.random.normal(
            ks[3], (num_layers, 1, WIDTH), jnp.float32),
        "w_out": scale * jax.random.normal(ks[4], (WIDTH, num_output), jnp.float32),
        "b_out": scale * jax.random.normal(ks[5], (1, num_output), jnp.float32),
    }


def reference_forward(x, params):
    # Pure f32 reference (Dropout is identity in eval mode).
    h = jnp.maximum(x @ params["w_in"] + params["b_in"], 0.0)
    for l in range(params["w_hid"].shape[0]):
        h = jnp.maximum(h @ params["w_hid"][l] + params["b_hid"][l], 0.0)
    return jax.nn.sigmoid(h @ params["w_out"] + params["b_out"])


if __name__ == "__main__":
    num_layers = 3
    num_input = 32
    num_output = 16
    batch = 8

    key = jax.random.PRNGKey(0)
    kx, kp = jax.random.split(key)
    x = jax.random.normal(kx, (batch, num_input), jnp.float32)
    params = init_params(kp, num_layers, num_input, num_output)

    out = deepnn_forward(x, params)
    out = jax.block_until_ready(out)

    ref = reference_forward(x, params)
    assert out.shape == (batch, num_output), out.shape
    # bf16 MXU inputs with f32 accumulation / f32 activations vs. pure-f32 ref.
    assert jnp.allclose(out, ref, atol=2e-2, rtol=0.0), float(
        jnp.max(jnp.abs(out - ref)))

    # Also exercise the num_layers == 0 path (loop trip count 0).
    params0 = init_params(kp, 0, num_input, num_output)
    out0 = jax.block_until_ready(deepnn_forward(x, params0))
    ref0 = reference_forward(x, params0)
    assert jnp.allclose(out0, ref0, atol=2e-2, rtol=0.0)

    print("KERNEL_OK")
</pallas_src>

<mosaic_0001>
module attributes {stable_mosaic.version = 11 : i64} {
  func.func @kernel(%arg0: i32, %arg1: memref<8x128xbf16, #tpu.memory_space<vmem>>, %arg2: memref<128x256xbf16, #tpu.memory_space<vmem>>, %arg3: memref<1x256xf32, #tpu.memory_space<vmem>>, %arg4: memref<3x256x256xbf16, #tpu.memory_space<vmem>>, %arg5: memref<3x1x256xf32, #tpu.memory_space<vmem>>, %arg6: memref<256x128xbf16, #tpu.memory_space<vmem>>, %arg7: memref<1x128xf32, #tpu.memory_space<vmem>>, %arg8: memref<8x128xf32, #tpu.memory_space<vmem>>, %arg9: memref<8x256xf32, #tpu.memory_space<vmem>>) attributes {dimension_semantics = [#tpu.dimension_semantics<parallel>], iteration_bounds = array<i64: 1>, scalar_prefetch = 0 : i64, scratch_operands = 1 : i64, tpu.core_type = #tpu.core_type<tc>, window_params = [{transform_indices = @transform_0, window_bounds = array<i64: 8, 128>}, {pipeline_mode = #tpu.pipeline_mode<synchronous>, transform_indices = @transform_1, window_bounds = array<i64: 128, 256>}, {pipeline_mode = #tpu.pipeline_mode<synchronous>, transform_indices = @transform_2, window_bounds = array<i64: 1, 256>}, {pipeline_mode = #tpu.pipeline_mode<synchronous>, transform_indices = @transform_3, window_bounds = array<i64: 3, 256, 256>}, {pipeline_mode = #tpu.pipeline_mode<synchronous>, transform_indices = @transform_4, window_bounds = array<i64: 3, 1, 256>}, {pipeline_mode = #tpu.pipeline_mode<synchronous>, transform_indices = @transform_5, window_bounds = array<i64: 256, 128>}, {pipeline_mode = #tpu.pipeline_mode<synchronous>, transform_indices = @transform_6, window_bounds = array<i64: 1, 128>}, {transform_indices = @transform_7, window_bounds = array<i64: 8, 128>}]} {
    %c0 = arith.constant 0 : index
    %c0_0 = arith.constant 0 : index
    %0 = vector.load %arg1[%c0, %c0_0] : memref<8x128xbf16, #tpu.memory_space<vmem>>, vector<8x128xbf16>
    %c0_1 = arith.constant 0 : index
    %c0_2 = arith.constant 0 : index
    %1 = vector.load %arg2[%c0_1, %c0_2] : memref<128x256xbf16, #tpu.memory_space<vmem>>, vector<128x256xbf16>
    %cst = arith.constant dense<0.000000e+00> : vector<8x256xf32>
    %2 = tpu.matmul %0, %1, %cst {dimension_numbers = #tpu.dot_dimension_numbers<[1], [0], [0], [1], [0, 0, 1, 1], [], []>} : vector<8x128xbf16>, vector<128x256xbf16>, vector<8x256xf32> -> vector<8x256xf32>
    %c0_3 = arith.constant 0 : index
    %c0_4 = arith.constant 0 : index
    %3 = vector.load %arg3[%c0_3, %c0_4] : memref<1x256xf32, #tpu.memory_space<vmem>>, vector<1x256xf32>
    %4 = vector.broadcast %3 : vector<1x256xf32> to vector<8x256xf32>
    %5 = arith.addf %2, %4 : vector<8x256xf32>
    %cst_5 = arith.constant 0.000000e+00 : f32
    %6 = vector.broadcast %cst_5 : f32 to vector<8x256xf32>
    %7 = arith.maximumf %5, %6 : vector<8x256xf32>
    %c0_6 = arith.constant 0 : index
    %c0_7 = arith.constant 0 : index
    %8 = vector.load %arg9[%c0_6, %c0_7] : memref<8x256xf32, #tpu.memory_space<vmem>>, vector<8x256xf32>
    tpu.vector_store %arg9[%c0_6, %c0_7], %7 {strides = array<i32>} : memref<8x256xf32, #tpu.memory_space<vmem>>, vector<8x256xf32>,
    %c0_i32 = arith.constant 0 : i32
    %9 = arith.index_cast %c0_i32 : i32 to index
    %c0_8 = arith.constant 0 : index
    %c0_9 = arith.constant 0 : index
    %10 = vector.load %arg4[%9, %c0_8, %c0_9] : memref<3x256x256xbf16, #tpu.memory_space<vmem>>, vector<1x256x256xbf16>
    %11 = vector.shape_cast %10 : vector<1x256x256xbf16> to vector<256x256xbf16>
    %12 = arith.index_cast %c0_i32 : i32 to index
    %c0_10 = arith.constant 0 : index
    %c0_11 = arith.constant 0 : index
    %13 = vector.load %arg5[%12, %c0_10, %c0_11] : memref<3x1x256xf32, #tpu.memory_space<vmem>>, vector<1x1x256xf32>
    %14 = vector.shape_cast %13 : vector<1x1x256xf32> to vector<1x256xf32>
    %c0_12 = arith.constant 0 : index
    %c0_13 = arith.constant 0 : index
    %15 = vector.load %arg9[%c0_12, %c0_13] : memref<8x256xf32, #tpu.memory_space<vmem>>, vector<8x256xf32>
    %16 = arith.truncf %15 : vector<8x256xf32> to vector<8x256xbf16>
    %cst_14 = arith.constant dense<0.000000e+00> : vector<8x256xf32>
    %17 = tpu.matmul %16, %11, %cst_14 {dimension_numbers = #tpu.dot_dimension_numbers<[1], [0], [0], [1], [0, 0, 1, 1], [], []>} : vector<8x256xbf16>, vector<256x256xbf16>, vector<8x256xf32> -> vector<8x256xf32>
    %18 = vector.broadcast %14 : vector<1x256xf32> to vector<8x256xf32>
    %19 = arith.addf %17, %18 : vector<8x256xf32>
    %cst_15 = arith.constant 0.000000e+00 : f32
    %20 = vector.broadcast %cst_15 : f32 to vector<8x256xf32>
    %21 = arith.maximumf %19, %20 : vector<8x256xf32>
    %c0_16 = arith.constant 0 : index
    %c0_17 = arith.constant 0 : index
    %22 = vector.load %arg9[%c0_16, %c0_17] : memref<8x256xf32, #tpu.memory_space<vmem>>, vector<8x256xf32>
    tpu.vector_store %arg9[%c0_16, %c0_17], %21 {strides = array<i32>} : memref<8x256xf32, #tpu.memory_space<vmem>>, vector<8x256xf32>,
    %c1_i32 = arith.constant 1 : i32
    %23 = arith.index_cast %c1_i32 : i32 to index
    %c0_18 = arith.constant 0 : index
    %c0_19 = arith.constant 0 : index
    %24 = vector.load %arg4[%23, %c0_18, %c0_19] : memref<3x256x256xbf16, #tpu.memory_space<vmem>>, vector<1x256x256xbf16>
    %25 = vector.shape_cast %24 : vector<1x256x256xbf16> to vector<256x256xbf16>
    %26 = arith.index_cast %c1_i32 : i32 to index
    %c0_20 = arith.constant 0 : index
    %c0_21 = arith.constant 0 : index
    %27 = vector.load %arg5[%26, %c0_20, %c0_21] : memref<3x1x256xf32, #tpu.memory_space<vmem>>, vector<1x1x256xf32>
    %28 = vector.shape_cast %27 : vector<1x1x256xf32> to vector<1x256xf32>
    %c0_22 = arith.constant 0 : index
    %c0_23 = arith.constant 0 : index
    %29 = vector.load %arg9[%c0_22, %c0_23] : memref<8x256xf32, #tpu.memory_space<vmem>>, vector<8x256xf32>
    %30 = arith.truncf %29 : vector<8x256xf32> to vector<8x256xbf16>
    %cst_24 = arith.constant dense<0.000000e+00> : vector<8x256xf32>
    %31 = tpu.matmul %30, %25, %cst_24 {dimension_numbers = #tpu.dot_dimension_numbers<[1], [0], [0], [1], [0, 0, 1, 1], [], []>} : vector<8x256xbf16>, vector<256x256xbf16>, vector<8x256xf32> -> vector<8x256xf32>
    %32 = vector.broadcast %28 : vector<1x256xf32> to vector<8x256xf32>
    %33 = arith.addf %31, %32 : vector<8x256xf32>
    %cst_25 = arith.constant 0.000000e+00 : f32
    %34 = vector.broadcast %cst_25 : f32 to vector<8x256xf32>
    %35 = arith.maximumf %33, %34 : vector<8x256xf32>
    %c0_26 = arith.constant 0 : index
    %c0_27 = arith.constant 0 : index
    %36 = vector.load %arg9[%c0_26, %c0_27] : memref<8x256xf32, #tpu.memory_space<vmem>>, vector<8x256xf32>
    tpu.vector_store %arg9[%c0_26, %c0_27], %35 {strides = array<i32>} : memref<8x256xf32, #tpu.memory_space<vmem>>, vector<8x256xf32>,
    %c2_i32 = arith.constant 2 : i32
    %37 = arith.index_cast %c2_i32 : i32 to index
    %c0_28 = arith.constant 0 : index
    %c0_29 = arith.constant 0 : index
    %38 = vector.load %arg4[%37, %c0_28, %c0_29] : memref<3x256x256xbf16, #tpu.memory_space<vmem>>, vector<1x256x256xbf16>
    %39 = vector.shape_cast %38 : vector<1x256x256xbf16> to vector<256x256xbf16>
    %40 = arith.index_cast %c2_i32 : i32 to index
    %c0_30 = arith.constant 0 : index
    %c0_31 = arith.constant 0 : index
    %41 = vector.load %arg5[%40, %c0_30, %c0_31] : memref<3x1x256xf32, #tpu.memory_space<vmem>>, vector<1x1x256xf32>
    %42 = vector.shape_cast %41 : vector<1x1x256xf32> to vector<1x256xf32>
    %c0_32 = arith.constant 0 : index
    %c0_33 = arith.constant 0 : index
    %43 = vector.load %arg9[%c0_32, %c0_33] : memref<8x256xf32, #tpu.memory_space<vmem>>, vector<8x256xf32>
    %44 = arith.truncf %43 : vector<8x256xf32> to vector<8x256xbf16>
    %cst_34 = arith.constant dense<0.000000e+00> : vector<8x256xf32>
    %45 = tpu.matmul %44, %39, %cst_34 {dimension_numbers = #tpu.dot_dimension_numbers<[1], [0], [0], [1], [0, 0, 1, 1], [], []>} : vector<8x256xbf16>, vector<256x256xbf16>, vector<8x256xf32> -> vector<8x256xf32>
    %46 = vector.broadcast %42 : vector<1x256xf32> to vector<8x256xf32>
    %47 = arith.addf %45, %46 : vector<8x256xf32>
    %cst_35 = arith.constant 0.000000e+00 : f32
    %48 = vector.broadcast %cst_35 : f32 to vector<8x256xf32>
    %49 = arith.maximumf %47, %48 : vector<8x256xf32>
    %c0_36 = arith.constant 0 : index
    %c0_37 = arith.constant 0 : index
    %50 = vector.load %arg9[%c0_36, %c0_37] : memref<8x256xf32, #tpu.memory_space<vmem>>, vector<8x256xf32>
    tpu.vector_store %arg9[%c0_36, %c0_37], %49 {strides = array<i32>} : memref<8x256xf32, #tpu.memory_space<vmem>>, vector<8x256xf32>,
    %c3_i32 = arith.constant 3 : i32
    %c0_38 = arith.constant 0 : index
    %c0_39 = arith.constant 0 : index
    %51 = vector.load %arg9[%c0_38, %c0_39] : memref<8x256xf32, #tpu.memory_space<vmem>>, vector<8x256xf32>
    %52 = arith.truncf %51 : vector<8x256xf32> to vector<8x256xbf16>
    %c0_40 = arith.constant 0 : index
    %c0_41 = arith.constant 0 : index
    %53 = vector.load %arg6[%c0_40, %c0_41] : memref<256x128xbf16, #tpu.memory_space<vmem>>, vector<256x128xbf16>
    %cst_42 = arith.constant dense<0.000000e+00> : vector<8x128xf32>
    %54 = tpu.matmul %52, %53, %cst_42 {dimension_numbers = #tpu.dot_dimension_numbers<[1], [0], [0], [1], [0, 0, 1, 1], [], []>} : vector<8x256xbf16>, vector<256x128xbf16>, vector<8x128xf32> -> vector<8x128xf32>
    %c0_43 = arith.constant 0 : index
    %c0_44 = arith.constant 0 : index
    %55 = vector.load %arg7[%c0_43, %c0_44] : memref<1x128xf32, #tpu.memory_space<vmem>>, vector<1x128xf32>
    %56 = vector.broadcast %55 : vector<1x128xf32> to vector<8x128xf32>
    %57 = arith.addf %54, %56 : vector<8x128xf32>
    %58 = arith.negf %57 : vector<8x128xf32>
    %59 = math.exp %58 : vector<8x128xf32>
    %cst_45 = arith.constant 1.000000e+00 : f32
    %60 = vector.broadcast %cst_45 : f32 to vector<8x128xf32>
    %61 = arith.addf %60, %59 : vector<8x128xf32>
    %62 = arith.divf %60, %61 : vector<8x128xf32>
    %c0_46 = arith.constant 0 : index
    %c0_47 = arith.constant 0 : index
    %63 = vector.load %arg8[%c0_46, %c0_47] : memref<8x128xf32, #tpu.memory_space<vmem>>, vector<8x128xf32>
    tpu.vector_store %arg8[%c0_46, %c0_47], %62 {strides = array<i32>} : memref<8x128xf32, #tpu.memory_space<vmem>>, vector<8x128xf32>,
    return
  }
  func.func @transform_0(%arg0: i32) -> (i32, i32) {
    %c0_i32 = arith.constant 0 : i32
    %c0_i32_0 = arith.constant 0 : i32
    return %arg0, %c0_i32 : i32, i32
  }
  func.func @transform_1(%arg0: i32) -> (i32, i32) {
    %c0_i32 = arith.constant 0 : i32
    %c0_i32_0 = arith.constant 0 : i32
    %c0_i32_1 = arith.constant 0 : i32
    return %c0_i32, %c0_i32_0 : i32, i32
  }
  func.func @transform_2(%arg0: i32) -> (i32, i32) {
    %c0_i32 = arith.constant 0 : i32
    %c0_i32_0 = arith.constant 0 : i32
    %c0_i32_1 = arith.constant 0 : i32
    return %c0_i32, %c0_i32_0 : i32, i32
  }
  func.func @transform_3(%arg0: i32) -> (i32, i32, i32) {
    %c0_i32 = arith.constant 0 : i32
    %c0_i32_0 = arith.constant 0 : i32
    %c0_i32_1 = arith.constant 0 : i32
    %c0_i32_2 = arith.constant 0 : i32
    return %c0_i32, %c0_i32_0, %c0_i32_1 : i32, i32, i32
  }
  func.func @transform_4(%arg0: i32) -> (i32, i32, i32) {
    %c0_i32 = arith.constant 0 : i32
    %c0_i32_0 = arith.constant 0 : i32
    %c0_i32_1 = arith.constant 0 : i32
    %c0_i32_2 = arith.constant 0 : i32
    return %c0_i32, %c0_i32_0, %c0_i32_1 : i32, i32, i32
  }
  func.func @transform_5(%arg0: i32) -> (i32, i32) {
    %c0_i32 = arith.constant 0 : i32
    %c0_i32_0 = arith.constant 0 : i32
    %c0_i32_1 = arith.constant 0 : i32
    return %c0_i32, %c0_i32_0 : i32, i32
  }
  func.func @transform_6(%arg0: i32) -> (i32, i32) {
    %c0_i32 = arith.constant 0 : i32
    %c0_i32_0 = arith.constant 0 : i32
    %c0_i32_1 = arith.constant 0 : i32
    return %c0_i32, %c0_i32_0 : i32, i32
  }
  func.func @transform_7(%arg0: i32) -> (i32, i32) {
    %c0_i32 = arith.constant 0 : i32
    %c0_i32_0 = arith.constant 0 : i32
    return %arg0, %c0_i32 : i32, i32
  }
}

</mosaic_0001>

<llo_original>
// kernel: tpu_custom_call.1
$region0: #{tpu_custom_call.1}
  #allocation0 [shape = 'u32[]', space=smem, size = 0x4, offset = 0x4, fixed_abs, tag = 'smem constant byte address 0x4 - core index']
  #allocation1 [shape = 'u32[72,128]{1,0:T(1,128)}', space=vmem, size = 0x9000, scoped, tag = 'internal scratch']
  #allocation2 [shape = 'f32[8,256]{1,0:T(8,128)}', space=vmem, size = 0x2000, scoped, tag = 'scratch operand']
  %s0 = inlined_call_operand.hbm [shape: bf16[8,128], index: 0, kind: input, shape index: {}]
  %s1 = inlined_call_operand.hbm [shape: bf16[128,256], index: 1, kind: input, shape index: {}]
  %s2 = inlined_call_operand.hbm [shape: f32[1,256], index: 2, kind: input, shape index: {}]
  %s3 = inlined_call_operand.hbm [shape: bf16[3,256,256], index: 3, kind: input, shape index: {}]
  %s4 = inlined_call_operand.hbm [shape: f32[3,1,256], index: 4, kind: input, shape index: {}]
  %s5 = inlined_call_operand.hbm [shape: bf16[256,128], index: 5, kind: input, shape index: {}]
  %s6 = inlined_call_operand.vmem [shape: f32[1,128], index: 6, kind: input, shape index: {}]
  %s7 = inlined_call_operand.hbm [shape: f32[8,128], index: 7, kind: output, shape index: {}]
  %s8 = sld [smem:[#allocation0]]
  $region62: #{tpu_custom_call.1} parent=0
    _
  %s10 = ssub.s32 1, %s8
  %s11 = scalar_select 0, %s10, %s8
  $region1: #{tpu_custom_call.1} parent=0
    #allocation3 [shape = 'u8[2048]{0}', space=vmem, size = 0x800, scoped, tag = 'input window, operand 0, single buffered']
    #allocation4 [shape = 's32[1]{0}', space=sflag, size = 0x4, scoped, tag = 'scoped memory for tpu_custom_call.1']
    #allocation5 [shape = 's32[1]{0}', space=sflag, size = 0x4, scoped, tag = 'scoped memory for tpu_custom_call.1']
    #allocation6 [shape = 'u8[65536]{0}', space=vmem, size = 0x10000, scoped, tag = 'input window, operand 1, single buffered']
    #allocation7 [shape = 's32[1]{0}', space=sflag, size = 0x4, scoped, tag = 'scoped memory for tpu_custom_call.1']
    #allocation8 [shape = 'u8[1024]{0}', space=vmem, size = 0x400, scoped, tag = 'input window, operand 2, single buffered']
    #allocation9 [shape = 'u8[393216]{0}', space=vmem, size = 0x60000, scoped, tag = 'input window, operand 3, single buffered']
    #allocation10 [shape = 's32[1]{0}', space=sflag, size = 0x4, scoped, tag = 'scoped memory for tpu_custom_call.1']
    #allocation11 [shape = 'u8[3072]{0}', space=vmem, size = 0xc00, scoped, tag = 'input window, operand 4, single buffered']
    #allocation12 [shape = 'u8[65536]{0}', space=vmem, size = 0x10000, scoped, tag = 'input window, operand 5, single buffered']
    #allocation13 [shape = 's32[1]{0}', space=sflag, size = 0x4, scoped, tag = 'scoped memory for tpu_custom_call.1']
    #allocation14 [shape = 'u8[4096]{0}', space=vmem, size = 0x1000, scoped, tag = 'output window, operand 0, single buffered']
    %12 = vsyncpa [#allocation4], 0
    %13 = vsyncpa [#allocation7], 0
    %14 = vsyncpa [#allocation10], 0
    %15 = vsyncpa [#allocation13], 0
    %16 = vsyncpa [#allocation5], 0
    // Predicated region
    $region2: #{tpu_custom_call.1} parent=1 // pred_check
      _
    $region3: #{tpu_custom_call.1} parent=1 // pred_check_branch
      %18 = sbr.rel (0) target = $region5
    $region4: #{tpu_custom_call.1} parent=1 // pred_region
      %20 = vsyncadd [#allocation4], 0
      %s22 = sshll.u32 %s0, 4
      %s23 = int_to_ptr.hbm [resolvable:$true] %s22
      %s24 = sshll.u32 [#allocation3], 4
      %s25 = int_to_ptr.vmem [resolvable:$true] %s24
      %27 = dma.hbm_to_vmem [thread:$0]  %s23, 64, %s25, [#allocation4]
    $region5: #{tpu_custom_call.1} parent=1 // pred_fallthru
      _
    // Predicated region
    $region6: #{tpu_custom_call.1} parent=1 // pred_check
      _
    $region7: #{tpu_custom_call.1} parent=1 // pred_check_branch
      %29 = sbr.rel (0) target = $region9
    $region8: #{tpu_custom_call.1} parent=1 // pred_region
      %31 = vsyncadd [#allocation7], 0
      %s32 = sshll.u32 %s1, 4
      %s33 = int_to_ptr.hbm [resolvable:$true] %s32
      %s34 = sshll.u32 [#allocation6], 4
      %s35 = int_to_ptr.vmem [resolvable:$true] %s34
      %40 = dma.hbm_to_vmem [thread:$0]  %s33, 2048, %s35, [#allocation7], 128, 128, 8
    $region9: #{tpu_custom_call.1} parent=1 // pred_fallthru
      _
    // Predicated region
    $region10: #{tpu_custom_call.1} parent=1 // pred_check
      _
    $region11: #{tpu_custom_call.1} parent=1 // pred_check_branch
      %42 = sbr.rel (0) target = $region13
    $region12: #{tpu_custom_call.1} parent=1 // pred_region
      %44 = vsyncadd [#allocation7], 0
      %s46 = sshll.u32 %s2, 4
      %s47 = int_to_ptr.hbm [resolvable:$true] %s46
      %s48 = sshll.u32 [#allocation8], 4
      %s49 = int_to_ptr.vmem [resolvable:$true] %s48
      %51 = dma.hbm_to_vmem [thread:$0]  %s47, 32, %s49, [#allocation7]
    $region13: #{tpu_custom_call.1} parent=1 // pred_fallthru
      _
    // Predicated region
    $region14: #{tpu_custom_call.1} parent=1 // pred_check
      _
    $region15: #{tpu_custom_call.1} parent=1 // pred_check_branch
      %53 = sbr.rel (0) target = $region17
    $region16: #{tpu_custom_call.1} parent=1 // pred_region
      %55 = vsyncadd [#allocation10], 0
      %s56 = sshll.u32 %s3, 4
      %s57 = int_to_ptr.hbm [resolvable:$true] %s56
      %s58 = sshll.u32 [#allocation9], 4
      %s59 = int_to_ptr.vmem [resolvable:$true] %s58
      %64 = dma.hbm_to_vmem [thread:$0]  %s57, 12288, %s59, [#allocation10], 128, 128, 8
    $region17: #{tpu_custom_call.1} parent=1 // pred_fallthru
      _
    // Predicated region
    $region18: #{tpu_custom_call.1} parent=1 // pred_check
      _
    $region19: #{tpu_custom_call.1} parent=1 // pred_check_branch
      %66 = sbr.rel (0) target = $region21
    $region20: #{tpu_custom_call.1} parent=1 // pred_region
      %68 = vsyncadd [#allocation10], 0
      %s69 = sshll.u32 %s4, 4
      %s70 = int_to_ptr.hbm [resolvable:$true] %s69
      %s71 = sshll.u32 [#allocation11], 4
      %s72 = int_to_ptr.vmem [resolvable:$true] %s71
      %77 = dma.hbm_to_vmem [thread:$0]  %s70, 96, %s72, [#allocation10], 32, 32, 2
    $region21: #{tpu_custom_call.1} parent=1 // pred_fallthru
      _
    // Predicated region
    $region22: #{tpu_custom_call.1} parent=1 // pred_check
      _
    $region23: #{tpu_custom_call.1} parent=1 // pred_check_branch
      %79 = sbr.rel (0) target = $region25
    $region24: #{tpu_custom_call.1} parent=1 // pred_region
      %81 = vsyncadd [#allocation13], 0
      %s82 = sshll.u32 %s5, 4
      %s83 = int_to_ptr.hbm [resolvable:$true] %s82
      %s84 = sshll.u32 [#allocation12], 4
      %s85 = int_to_ptr.vmem [resolvable:$true] %s84
      %90 = dma.hbm_to_vmem [thread:$0]  %s83, 2048, %s85, [#allocation13], 64, 64, 4
    $region25: #{tpu_custom_call.1} parent=1 // pred_fallthru
      _
    // Predicated region
    $region26: #{tpu_custom_call.1} parent=1 // pred_check
      _
    $region27: #{tpu_custom_call.1} parent=1 // pred_check_branch
      %92 = sbr.rel (0) target = $region29
    $region28: #{tpu_custom_call.1} parent=1 // pred_region
      _
    $region29: #{tpu_custom_call.1} parent=1 // pred_fallthru
      _
    // Predicated region
    $region30: #{tpu_custom_call.1} parent=1 // pred_check
      _
    $region31: #{tpu_custom_call.1} parent=1 // pred_check_branch
      %94 = sbr.rel (0) target = $region33
    $region32: #{tpu_custom_call.1} parent=1 // pred_region
      %96 = dma.done [#allocation4], 64
    $region33: #{tpu_custom_call.1} parent=1 // pred_fallthru
      _
    // Predicated region
    $region34: #{tpu_custom_call.1} parent=1 // pred_check
      _
    $region35: #{tpu_custom_call.1} parent=1 // pred_check_branch
      %98 = sbr.rel (0) target = $region37
    $region36: #{tpu_custom_call.1} parent=1 // pred_region
      %100 = dma.done [#allocation7], 2048
    $region37: #{tpu_custom_call.1} parent=1 // pred_fallthru
      _
    // Predicated region
    $region38: #{tpu_custom_call.1} parent=1 // pred_check
      _
    $region39: #{tpu_custom_call.1} parent=1 // pred_check_branch
      %102 = sbr.rel (0) target = $region41
    $region40: #{tpu_custom_call.1} parent=1 // pred_region
      %104 = dma.done [#allocation7], 32
    $region41: #{tpu_custom_call.1} parent=1 // pred_fallthru
      _
    // Predicated region
    $region42: #{tpu_custom_call.1} parent=1 // pred_check
      _
    $region43: #{tpu_custom_call.1} parent=1 // pred_check_branch
      %106 = sbr.rel (0) target = $region45
    $region44: #{tpu_custom_call.1} parent=1 // pred_region
      %108 = dma.done [#allocation10], 12288
    $region45: #{tpu_custom_call.1} parent=1 // pred_fallthru
      _
    // Predicated region
    $region46: #{tpu_custom_call.1} parent=1 // pred_check
      _
    $region47: #{tpu_custom_call.1} parent=1 // pred_check_branch
      %110 = sbr.rel (0) target = $region49
    $region48: #{tpu_custom_call.1} parent=1 // pred_region
      %112 = dma.done [#allocation10], 96
    $region49: #{tpu_custom_call.1} parent=1 // pred_fallthru
      _
    // Predicated region
    $region50: #{tpu_custom_call.1} parent=1 // pred_check
      _
    $region51: #{tpu_custom_call.1} parent=1 // pred_check_branch
      %114 = sbr.rel (0) target = $region53
    $region52: #{tpu_custom_call.1} parent=1 // pred_region
      %116 = dma.done [#allocation13], 2048
    $region53: #{tpu_custom_call.1} parent=1 // pred_fallthru
      _
    %v117 = vld [vmem:[#allocation3] sm:$0xf]
    %v118 = vld [vmem:[#allocation6] sm:$0xff]
    %v119 = vld [vmem:[#allocation6 + $0x8] sm:$0xff]
    %v120 = vld [vmem:[#allocation6 + $0x10] sm:$0xff]
    %v121 = vld [vmem:[#allocation6 + $0x18] sm:$0xff]
    %v122 = vld [vmem:[#allocation6 + $0x20] sm:$0xff]
    %v123 = vld [vmem:[#allocation6 + $0x28] sm:$0xff]
    %v124 = vld [vmem:[#allocation6 + $0x30] sm:$0xff]
    %v125 = vld [vmem:[#allocation6 + $0x38] sm:$0xff]
    %v126 = vld [vmem:[#allocation6 + $0x40] sm:$0xff]
    %v127 = vld [vmem:[#allocation6 + $0x48] sm:$0xff]
    %v128 = vld [vmem:[#allocation6 + $0x50] sm:$0xff]
    %v129 = vld [vmem:[#allocation6 + $0x58] sm:$0xff]
    %v130 = vld [vmem:[#allocation6 + $0x60] sm:$0xff]
    %v131 = vld [vmem:[#allocation6 + $0x68] sm:$0xff]
    %v132 = vld [vmem:[#allocation6 + $0x70] sm:$0xff]
    %v133 = vld [vmem:[#allocation6 + $0x78] sm:$0xff]
    %v134 = vld [vmem:[#allocation8] sm:$0x3]
    %v136 = vperm.slane %v134, 0
    %v137 = vperm.slane %v134, 1
    %v156 = vunpack.c.l.b16 %v118
    %v157 = vunpack.c.h.b16 %v118
    %v158 = vunpack.c.l.b16 %v119
    %v159 = vunpack.c.h.b16 %v119
    %v160 = vunpack.c.l.b16 %v120
    %v161 = vunpack.c.h.b16 %v120
    %v162 = vunpack.c.l.b16 %v121
    %v163 = vunpack.c.h.b16 %v121
    %v164 = vunpack.c.l.b16 %v122
    %v165 = vunpack.c.h.b16 %v122
    %v166 = vunpack.c.l.b16 %v123
    %v167 = vunpack.c.h.b16 %v123
    %v168 = vunpack.c.l.b16 %v124
    %v169 = vunpack.c.h.b16 %v124
    %v170 = vunpack.c.l.b16 %v125
    %v171 = vunpack.c.h.b16 %v125
    %v172 = vunpack.c.l.b16 %v126
    %v173 = vunpack.c.h.b16 %v126
    %v174 = vunpack.c.l.b16 %v127
    %v175 = vunpack.c.h.b16 %v127
    %v176 = vunpack.c.l.b16 %v128
    %v177 = vunpack.c.h.b16 %v128
    %v178 = vunpack.c.l.b16 %v129
    %v179 = vunpack.c.h.b16 %v129
    %v180 = vunpack.c.l.b16 %v130
    %v181 = vunpack.c.h.b16 %v130
    %v182 = vunpack.c.l.b16 %v131
    %v183 = vunpack.c.h.b16 %v131
    %v184 = vunpack.c.l.b16 %v132
    %v185 = vunpack.c.h.b16 %v132
    %v186 = vunpack.c.l.b16 %v133
    %v187 = vunpack.c.h.b16 %v133
    %v188 = vpack.c.b16 %v158, %v156
    %v189 = vpack.c.b16 %v159, %v157
    %v190 = vpack.c.b16 %v162, %v160
    %v191 = vpack.c.b16 %v163, %v161
    %v192 = vpack.c.b16 %v166, %v164
    %v193 = vpack.c.b16 %v167, %v165
    %v194 = vpack.c.b16 %v170, %v168
    %v195 = vpack.c.b16 %v171, %v169
    %v196 = vpack.c.b16 %v174, %v172
    %v197 = vpack.c.b16 %v175, %v173
    %v198 = vpack.c.b16 %v178, %v176
    %v199 = vpack.c.b16 %v179, %v177
    %v200 = vpack.c.b16 %v182, %v180
    %v201 = vpack.c.b16 %v183, %v181
    %v202 = vpack.c.b16 %v186, %v184
    %v203 = vpack.c.b16 %v187, %v185
    %220 = vmatpush.bf16.msra.mxu0 %v202
    %221 = vmatpush.bf16.msra.mxu0 %v200
    %222 = vmatpush.bf16.msra.mxu0 %v198
    %223 = vmatpush.bf16.msra.mxu0 %v196
    %224 = vmatpush.bf16.msra.mxu0 %v194
    %225 = vmatpush.bf16.msra.mxu0 %v192
    %226 = vmatpush.bf16.msra.mxu0 %v190
    %227 = vmatpush.bf16.msra.mxu0 %v188
    %228 = vmatmul.bf16.gmra.mxu0 %v117
    %v229 = vpop.f32.mrf.mxu0
    %v230 = vadd.f32 %v136, %v229
    %v231 = vpop.f32.mrf.mxu0
    %232 = vdwg.mxu0
    %233 = vmatpush.bf16.msra.mxu0 %v203
    %234 = vmatpush.bf16.msra.mxu0 %v201
    %235 = vmatpush.bf16.msra.mxu0 %v199
    %236 = vmatpush.bf16.msra.mxu0 %v197
    %237 = vmatpush.bf16.msra.mxu0 %v195
    %238 = vmatpush.bf16.msra.mxu0 %v193
    %239 = vmatpush.bf16.msra.mxu0 %v191
    %240 = vmatpush.bf16.msra.mxu0 %v189
    %241 = vmatmul.bf16.gmra.mxu0 %v117
    %v242 = vpop.f32.mrf.mxu0
    %v243 = vadd.f32 %v137, %v242
    %v244 = vpop.f32.mrf.mxu0
    %245 = vdwg.mxu0
    %v246 = vmax.f32 %v230, 0.0
    %v247 = vmax.f32 %v243, 0.0
    %248 = vst [vmem:[#allocation2] sm:$0xff] %v246
    %249 = vst [vmem:[#allocation2 + $0x8] sm:$0xff] %v247
    %v250 = vld [vmem:[#allocation9] sm:$0xff]
    %v251 = vld [vmem:[#allocation9 + $0x8] sm:$0xff]
    %v252 = vld [vmem:[#allocation9 + $0x10] sm:$0xff]
    %v253 = vld [vmem:[#allocation9 + $0x18] sm:$0xff]
    %v254 = vld [vmem:[#allocation9 + $0x20] sm:$0xff]
    %v255 = vld [vmem:[#allocation9 + $0x28] sm:$0xff]
    %v256 = vld [vmem:[#allocation9 + $0x30] sm:$0xff]
    %v257 = vld [vmem:[#allocation9 + $0x38] sm:$0xff]
    %v258 = vld [vmem:[#allocation9 + $0x40] sm:$0xff]
    %v259 = vld [vmem:[#allocation9 + $0x48] sm:$0xff]
    %v260 = vld [vmem:[#allocation9 + $0x50] sm:$0xff]
    %v261 = vld [vmem:[#allocation9 + $0x58] sm:$0xff]
    %v262 = vld [vmem:[#allocation9 + $0x60] sm:$0xff]
    %v263 = vld [vmem:[#allocation9 + $0x68] sm:$0xff]
    %v264 = vld [vmem:[#allocation9 + $0x70] sm:$0xff]
    %v265 = vld [vmem:[#allocation9 + $0x78] sm:$0xff]
    %v266 = vld [vmem:[#allocation9 + $0x80] sm:$0xff]
    %v267 = vld [vmem:[#allocation9 + $0x88] sm:$0xff]
    %v268 = vld [vmem:[#allocation9 + $0x90] sm:$0xff]
    %v269 = vld [vmem:[#allocation9 + $0x98] sm:$0xff]
    %v270 = vld [vmem:[#allocation9 + $0xa0] sm:$0xff]
    %v271 = vld [vmem:[#allocation9 + $0xa8] sm:$0xff]
    %v272 = vld [vmem:[#allocation9 + $0xb0] sm:$0xff]
    %v273 = vld [vmem:[#allocation9 + $0xb8] sm:$0xff]
    %v274 = vld [vmem:[#allocation9 + $0xc0] sm:$0xff]
    %v275 = vld [vmem:[#allocation9 + $0xc8] sm:$0xff]
    %v276 = vld [vmem:[#allocation9 + $0xd0] sm:$0xff]
    %v277 = vld [vmem:[#allocation9 + $0xd8] sm:$0xff]
    %v278 = vld [vmem:[#allocation9 + $0xe0] sm:$0xff]
    %v279 = vld [vmem:[#allocation9 + $0xe8] sm:$0xff]
    %v280 = vld [vmem:[#allocation9 + $0xf0] sm:$0xff]
    %v281 = vld [vmem:[#allocation9 + $0xf8] sm:$0xff]
    %v282 = vld [vmem:[#allocation11] sm:$0x3]
    %v283 = vld [vmem:[#allocation2] sm:$0xff]
    %v284 = vld [vmem:[#allocation2 + $0x8] sm:$0xff]
    %v285 = vpack.c.bf16 %v283, %v283
    %v286 = vpack.c.bf16 %v284, %v284
    %v288 = vperm.slane %v282, 0
    %v289 = vperm.slane %v282, 1
    %v324 = vunpack.c.l.b16 %v250
    %v325 = vunpack.c.h.b16 %v250
    %v326 = vunpack.c.l.b16 %v251
    %v327 = vunpack.c.h.b16 %v251
    %v328 = vunpack.c.l.b16 %v252
    %v329 = vunpack.c.h.b16 %v252
    %v330 = vunpack.c.l.b16 %v253
    %v331 = vunpack.c.h.b16 %v253
    %v332 = vunpack.c.l.b16 %v254
    %v333 = vunpack.c.h.b16 %v254
    %v334 = vunpack.c.l.b16 %v255
    %v335 = vunpack.c.h.b16 %v255
    %v336 = vunpack.c.l.b16 %v256
    %v337 = vunpack.c.h.b16 %v256
    %v338 = vunpack.c.l.b16 %v257
    %v339 = vunpack.c.h.b16 %v257
    %v340 = vunpack.c.l.b16 %v258
    %v341 = vunpack.c.h.b16 %v258
    %v342 = vunpack.c.l.b16 %v259
    %v343 = vunpack.c.h.b16 %v259
    %v344 = vunpack.c.l.b16 %v260
    %v345 = vunpack.c.h.b16 %v260
    %v346 = vunpack.c.l.b16 %v261
    %v347 = vunpack.c.h.b16 %v261
    %v348 = vunpack.c.l.b16 %v262
    %v349 = vunpack.c.h.b16 %v262
    %v350 = vunpack.c.l.b16 %v263
    %v351 = vunpack.c.h.b16 %v263
    %v352 = vunpack.c.l.b16 %v264
    %v353 = vunpack.c.h.b16 %v264
    %v354 = vunpack.c.l.b16 %v265
    %v355 = vunpack.c.h.b16 %v265
    %v356 = vunpack.c.l.b16 %v266
    %v357 = vunpack.c.h.b16 %v266
    %v358 = vunpack.c.l.b16 %v267
    %v359 = vunpack.c.h.b16 %v267
    %v360 = vunpack.c.l.b16 %v268
    %v361 = vunpack.c.h.b16 %v268
    %v362 = vunpack.c.l.b16 %v269
    %v363 = vunpack.c.h.b16 %v269
    %v364 = vunpack.c.l.b16 %v270
    %v365 = vunpack.c.h.b16 %v270
    %v366 = vunpack.c.l.b16 %v271
    %v367 = vunpack.c.h.b16 %v271
    %v368 = vunpack.c.l.b16 %v272
    %v369 = vunpack.c.h.b16 %v272
    %v370 = vunpack.c.l.b16 %v273
    %v371 = vunpack.c.h.b16 %v273
    %v372 = vunpack.c.l.b16 %v274
    %v373 = vunpack.c.h.b16 %v274
    %v374 = vunpack.c.l.b16 %v275
    %v375 = vunpack.c.h.b16 %v275
    %v376 = vunpack.c.l.b16 %v276
    %v377 = vunpack.c.h.b16 %v276
    %v378 = vunpack.c.l.b16 %v277
    %v379 = vunpack.c.h.b16 %v277
    %v380 = vunpack.c.l.b16 %v278
    %v381 = vunpack.c.h.b16 %v278
    %v382 = vunpack.c.l.b16 %v279
    %v383 = vunpack.c.h.b16 %v279
    %v384 = vunpack.c.l.b16 %v280
    %v385 = vunpack.c.h.b16 %v280
    %v386 = vunpack.c.l.b16 %v281
    %v387 = vunpack.c.h.b16 %v281
    %v388 = vpack.c.b16 %v326, %v324
    %v389 = vpack.c.b16 %v327, %v325
    %v390 = vpack.c.b16 %v330, %v328
    %v391 = vpack.c.b16 %v331, %v329
    %v392 = vpack.c.b16 %v334, %v332
    %v393 = vpack.c.b16 %v335, %v333
    %v394 = vpack.c.b16 %v338, %v336
    %v395 = vpack.c.b16 %v339, %v337
    %v396 = vpack.c.b16 %v342, %v340
    %v397 = vpack.c.b16 %v343, %v341
    %v398 = vpack.c.b16 %v346, %v344
    %v399 = vpack.c.b16 %v347, %v345
    %v400 = vpack.c.b16 %v350, %v348
    %v401 = vpack.c.b16 %v351, %v349
    %v402 = vpack.c.b16 %v354, %v352
    %v403 = vpack.c.b16 %v355, %v353
    %v404 = vpack.c.b16 %v358, %v356
    %v405 = vpack.c.b16 %v359, %v357
    %v406 = vpack.c.b16 %v362, %v360
    %v407 = vpack.c.b16 %v363, %v361
    %v408 = vpack.c.b16 %v366, %v364
    %v409 = vpack.c.b16 %v367, %v365
    %v410 = vpack.c.b16 %v370, %v368
    %v411 = vpack.c.b16 %v371, %v369
    %v412 = vpack.c.b16 %v374, %v372
    %v413 = vpack.c.b16 %v375, %v373
    %v414 = vpack.c.b16 %v378, %v376
    %v415 = vpack.c.b16 %v379, %v377
    %v416 = vpack.c.b16 %v382, %v380
    %v417 = vpack.c.b16 %v383, %v381
    %v418 = vpack.c.b16 %v386, %v384
    %v419 = vpack.c.b16 %v387, %v385
    %452 = vmatpush.bf16.msra.mxu0 %v402
    %453 = vmatpush.bf16.msra.mxu0 %v400
    %454 = vmatpush.bf16.msra.mxu0 %v398
    %455 = vmatpush.bf16.msra.mxu0 %v396
    %456 = vmatpush.bf16.msra.mxu0 %v394
    %457 = vmatpush.bf16.msra.mxu0 %v392
    %458 = vmatpush.bf16.msra.mxu0 %v390
    %459 = vmatpush.bf16.msra.mxu0 %v388
    %460 = vmatmul.bf16.gmra.mxu0 %v285
    %v461 = vpop.f32.mrf.mxu0
    %v462 = vadd.f32 %v288, %v461
    %v463 = vpop.f32.mrf.mxu0
    %464 = vdwg.mxu0
    %465 = vmatpush.bf16.msra.mxu0 %v418
    %466 = vmatpush.bf16.msra.mxu0 %v416
    %467 = vmatpush.bf16.msra.mxu0 %v414
    %468 = vmatpush.bf16.msra.mxu0 %v412
    %469 = vmatpush.bf16.msra.mxu0 %v410
    %470 = vmatpush.bf16.msra.mxu0 %v408
    %471 = vmatpush.bf16.msra.mxu0 %v406
    %472 = vmatpush.bf16.msra.mxu0 %v404
    %473 = vmatmul.bf16.gmra.mxu0 %v286
    %v474 = vpop.f32.mrf.mxu0
    %v475 = vadd.f32 %v462, %v474
    %v476 = vpop.f32.mrf.mxu0
    %477 = vdwg.mxu0
    %478 = vmatpush.bf16.msra.mxu0 %v403
    %479 = vmatpush.bf16.msra.mxu0 %v401
    %480 = vmatpush.bf16.msra.mxu0 %v399
    %481 = vmatpush.bf16.msra.mxu0 %v397
    %482 = vmatpush.bf16.msra.mxu0 %v395
    %483 = vmatpush.bf16.msra.mxu0 %v393
    %484 = vmatpush.bf16.msra.mxu0 %v391
    %485 = vmatpush.bf16.msra.mxu0 %v389
    %486 = vmatmul.bf16.gmra.mxu0 %v285
    %v487 = vpop.f32.mrf.mxu0
    %v488 = vadd.f32 %v289, %v487
    %v489 = vpop.f32.mrf.mxu0
    %490 = vdwg.mxu0
    %491 = vmatpush.bf16.msra.mxu0 %v419
    %492 = vmatpush.bf16.msra.mxu0 %v417
    %493 = vmatpush.bf16.msra.mxu0 %v415
    %494 = vmatpush.bf16.msra.mxu0 %v413
    %495 = vmatpush.bf16.msra.mxu0 %v411
    %496 = vmatpush.bf16.msra.mxu0 %v409
    %497 = vmatpush.bf16.msra.mxu0 %v407
    %498 = vmatpush.bf16.msra.mxu0 %v405
    %499 = vmatmul.bf16.gmra.mxu0 %v286
    %v500 = vpop.f32.mrf.mxu0
    %v501 = vadd.f32 %v488, %v500
    %v502 = vpop.f32.mrf.mxu0
    %503 = vdwg.mxu0
    %v504 = vmax.f32 %v475, 0.0
    %v505 = vmax.f32 %v501, 0.0
    %506 = vst [vmem:[#allocation2] sm:$0xff] %v504
    %507 = vst [vmem:[#allocation2 + $0x8] sm:$0xff] %v505
    %s508 = scalar_lea.vmem [#allocation9], 256
    %v509 = vld [vmem:[%s508] sm:$0xff]
    %v510 = vld [vmem:[%s508 + $0x8] sm:$0xff]
    %v511 = vld [vmem:[%s508 + $0x10] sm:$0xff]
    %v512 = vld [vmem:[%s508 + $0x18] sm:$0xff]
    %v513 = vld [vmem:[%s508 + $0x20] sm:$0xff]
    %v514 = vld [vmem:[%s508 + $0x28] sm:$0xff]
    %v515 = vld [vmem:[%s508 + $0x30] sm:$0xff]
    %v516 = vld [vmem:[%s508 + $0x38] sm:$0xff]
    %v517 = vld [vmem:[%s508 + $0x40] sm:$0xff]
    %v518 = vld [vmem:[%s508 + $0x48] sm:$0xff]
    %v519 = vld [vmem:[%s508 + $0x50] sm:$0xff]
    %v520 = vld [vmem:[%s508 + $0x58] sm:$0xff]
    %v521 = vld [vmem:[%s508 + $0x60] sm:$0xff]
    %v522 = vld [vmem:[%s508 + $0x68] sm:$0xff]
    %v523 = vld [vmem:[%s508 + $0x70] sm:$0xff]
    %v524 = vld [vmem:[%s508 + $0x78] sm:$0xff]
    %v525 = vld [vmem:[%s508 + $0x80] sm:$0xff]
    %v526 = vld [vmem:[%s508 + $0x88] sm:$0xff]
    %v527 = vld [vmem:[%s508 + $0x90] sm:$0xff]
    %v528 = vld [vmem:[%s508 + $0x98] sm:$0xff]
    %v529 = vld [vmem:[%s508 + $0xa0] sm:$0xff]
    %v530 = vld [vmem:[%s508 + $0xa8] sm:$0xff]
    %v531 = vld [vmem:[%s508 + $0xb0] sm:$0xff]
    %v532 = vld [vmem:[%s508 + $0xb8] sm:$0xff]
    %v533 = vld [vmem:[%s508 + $0xc0] sm:$0xff]
    %v534 = vld [vmem:[%s508 + $0xc8] sm:$0xff]
    %v535 = vld [vmem:[%s508 + $0xd0] sm:$0xff]
    %v536 = vld [vmem:[%s508 + $0xd8] sm:$0xff]
    %v537 = vld [vmem:[%s508 + $0xe0] sm:$0xff]
    %v538 = vld [vmem:[%s508 + $0xe8] sm:$0xff]
    %v539 = vld [vmem:[%s508 + $0xf0] sm:$0xff]
    %v540 = vld [vmem:[%s508 + $0xf8] sm:$0xff]
    %s541 = scalar_lea.vmem [#allocation11], 2
    %v542 = vld [vmem:[%s541] sm:$0x3]
    %v543 = vld [vmem:[#allocation2] sm:$0xff]
    %v544 = vld [vmem:[#allocation2 + $0x8] sm:$0xff]
    %v545 = vpack.c.bf16 %v543, %v543
    %v546 = vpack.c.bf16 %v544, %v544
    %v548 = vperm.slane %v542, 0
    %v549 = vperm.slane %v542, 1
    %v584 = vunpack.c.l.b16 %v509
    %v585 = vunpack.c.h.b16 %v509
    %v586 = vunpack.c.l.b16 %v510
    %v587 = vunpack.c.h.b16 %v510
    %v588 = vunpack.c.l.b16 %v511
    %v589 = vunpack.c.h.b16 %v511
    %v590 = vunpack.c.l.b16 %v512
    %v591 = vunpack.c.h.b16 %v512
    %v592 = vunpack.c.l.b16 %v513
    %v593 = vunpack.c.h.b16 %v513
    %v594 = vunpack.c.l.b16 %v514
    %v595 = vunpack.c.h.b16 %v514
    %v596 = vunpack.c.l.b16 %v515
    %v597 = vunpack.c.h.b16 %v515
    %v598 = vunpack.c.l.b16 %v516
    %v599 = vunpack.c.h.b16 %v516
    %v600 = vunpack.c.l.b16 %v517
    %v601 = vunpack.c.h.b16 %v517
    %v602 = vunpack.c.l.b16 %v518
    %v603 = vunpack.c.h.b16 %v518
    %v604 = vunpack.c.l.b16 %v519
    %v605 = vunpack.c.h.b16 %v519
    %v606 = vunpack.c.l.b16 %v520
    %v607 = vunpack.c.h.b16 %v520
    %v608 = vunpack.c.l.b16 %v521
    %v609 = vunpack.c.h.b16 %v521
    %v610 = vunpack.c.l.b16 %v522
    %v611 = vunpack.c.h.b16 %v522
    %v612 = vunpack.c.l.b16 %v523
    %v613 = vunpack.c.h.b16 %v523
    %v614 = vunpack.c.l.b16 %v524
    %v615 = vunpack.c.h.b16 %v524
    %v616 = vunpack.c.l.b16 %v525
    %v617 = vunpack.c.h.b16 %v525
    %v618 = vunpack.c.l.b16 %v526
    %v619 = vunpack.c.h.b16 %v526
    %v620 = vunpack.c.l.b16 %v527
    %v621 = vunpack.c.h.b16 %v527
    %v622 = vunpack.c.l.b16 %v528
    %v623 = vunpack.c.h.b16 %v528
    %v624 = vunpack.c.l.b16 %v529
    %v625 = vunpack.c.h.b16 %v529
    %v626 = vunpack.c.l.b16 %v530
    %v627 = vunpack.c.h.b16 %v530
    %v628 = vunpack.c.l.b16 %v531
    %v629 = vunpack.c.h.b16 %v531
    %v630 = vunpack.c.l.b16 %v532
    %v631 = vunpack.c.h.b16 %v532
    %v632 = vunpack.c.l.b16 %v533
    %v633 = vunpack.c.h.b16 %v533
    %v634 = vunpack.c.l.b16 %v534
    %v635 = vunpack.c.h.b16 %v534
    %v636 = vunpack.c.l.b16 %v535
    %v637 = vunpack.c.h.b16 %v535
    %v638 = vunpack.c.l.b16 %v536
    %v639 = vunpack.c.h.b16 %v536
    %v640 = vunpack.c.l.b16 %v537
    %v641 = vunpack.c.h.b16 %v537
    %v642 = vunpack.c.l.b16 %v538
    %v643 = vunpack.c.h.b16 %v538
    %v644 = vunpack.c.l.b16 %v539
    %v645 = vunpack.c.h.b16 %v539
    %v646 = vunpack.c.l.b16 %v540
    %v647 = vunpack.c.h.b16 %v540
    %v648 = vpack.c.b16 %v586, %v584
    %v649 = vpack.c.b16 %v587, %v585
    %v650 = vpack.c.b16 %v590, %v588
    %v651 = vpack.c.b16 %v591, %v589
    %v652 = vpack.c.b16 %v594, %v592
    %v653 = vpack.c.b16 %v595, %v593
    %v654 = vpack.c.b16 %v598, %v596
    %v655 = vpack.c.b16 %v599, %v597
    %v656 = vpack.c.b16 %v602, %v600
    %v657 = vpack.c.b16 %v603, %v601
    %v658 = vpack.c.b16 %v606, %v604
    %v659 = vpack.c.b16 %v607, %v605
    %v660 = vpack.c.b16 %v610, %v608
    %v661 = vpack.c.b16 %v611, %v609
    %v662 = vpack.c.b16 %v614, %v612
    %v663 = vpack.c.b16 %v615, %v613
    %v664 = vpack.c.b16 %v618, %v616
    %v665 = vpack.c.b16 %v619, %v617
    %v666 = vpack.c.b16 %v622, %v620
    %v667 = vpack.c.b16 %v623, %v621
    %v668 = vpack.c.b16 %v626, %v624
    %v669 = vpack.c.b16 %v627, %v625
    %v670 = vpack.c.b16 %v630, %v628
    %v671 = vpack.c.b16 %v631, %v629
    %v672 = vpack.c.b16 %v634, %v632
    %v673 = vpack.c.b16 %v635, %v633
    %v674 = vpack.c.b16 %v638, %v636
    %v675 = vpack.c.b16 %v639, %v637
    %v676 = vpack.c.b16 %v642, %v640
    %v677 = vpack.c.b16 %v643, %v641
    %v678 = vpack.c.b16 %v646, %v644
    %v679 = vpack.c.b16 %v647, %v645
    %712 = vmatpush.bf16.msra.mxu0 %v662
    %713 = vmatpush.bf16.msra.mxu0 %v660
    %714 = vmatpush.bf16.msra.mxu0 %v658
    %715 = vmatpush.bf16.msra.mxu0 %v656
    %716 = vmatpush.bf16.msra.mxu0 %v654
    %717 = vmatpush.bf16.msra.mxu0 %v652
    %718 = vmatpush.bf16.msra.mxu0 %v650
    %719 = vmatpush.bf16.msra.mxu0 %v648
    %720 = vmatmul.bf16.gmra.mxu0 %v545
    %v721 = vpop.f32.mrf.mxu0
    %v722 = vadd.f32 %v548, %v721
    %v723 = vpop.f32.mrf.mxu0
    %724 = vdwg.mxu0
    %725 = vmatpush.bf16.msra.mxu0 %v678
    %726 = vmatpush.bf16.msra.mxu0 %v676
    %727 = vmatpush.bf16.msra.mxu0 %v674
    %728 = vmatpush.bf16.msra.mxu0 %v672
    %729 = vmatpush.bf16.msra.mxu0 %v670
    %730 = vmatpush.bf16.msra.mxu0 %v668
    %731 = vmatpush.bf16.msra.mxu0 %v666
    %732 = vmatpush.bf16.msra.mxu0 %v664
    %733 = vmatmul.bf16.gmra.mxu0 %v546
    %v734 = vpop.f32.mrf.mxu0
    %v735 = vadd.f32 %v722, %v734
    %v736 = vpop.f32.mrf.mxu0
    %737 = vdwg.mxu0
    %738 = vmatpush.bf16.msra.mxu0 %v663
    %739 = vmatpush.bf16.msra.mxu0 %v661
    %740 = vmatpush.bf16.msra.mxu0 %v659
    %741 = vmatpush.bf16.msra.mxu0 %v657
    %742 = vmatpush.bf16.msra.mxu0 %v655
    %743 = vmatpush.bf16.msra.mxu0 %v653
    %744 = vmatpush.bf16.msra.mxu0 %v651
    %745 = vmatpush.bf16.msra.mxu0 %v649
    %746 = vmatmul.bf16.gmra.mxu0 %v545
    %v747 = vpop.f32.mrf.mxu0
    %v748 = vadd.f32 %v549, %v747
    %v749 = vpop.f32.mrf.mxu0
    %750 = vdwg.mxu0
    %751 = vmatpush.bf16.msra.mxu0 %v679
    %752 = vmatpush.bf16.msra.mxu0 %v677
    %753 = vmatpush.bf16.msra.mxu0 %v675
    %754 = vmatpush.bf16.msra.mxu0 %v673
    %755 = vmatpush.bf16.msra.mxu0 %v671
    %756 = vmatpush.bf16.msra.mxu0 %v669
    %757 = vmatpush.bf16.msra.mxu0 %v667
    %758 = vmatpush.bf16.msra.mxu0 %v665
    %759 = vmatmul.bf16.gmra.mxu0 %v546
    %v760 = vpop.f32.mrf.mxu0
    %v761 = vadd.f32 %v748, %v760
    %v762 = vpop.f32.mrf.mxu0
    %763 = vdwg.mxu0
    %v764 = vmax.f32 %v735, 0.0
    %v765 = vmax.f32 %v761, 0.0
    %766 = vst [vmem:[#allocation2] sm:$0xff] %v764
    %767 = vst [vmem:[#allocation2 + $0x8] sm:$0xff] %v765
    %s768 = scalar_lea.vmem [#allocation9], 512
    %v769 = vld [vmem:[%s768] sm:$0xff]
    %v770 = vld [vmem:[%s768 + $0x8] sm:$0xff]
    %v771 = vld [vmem:[%s768 + $0x10] sm:$0xff]
    %v772 = vld [vmem:[%s768 + $0x18] sm:$0xff]
    %v773 = vld [vmem:[%s768 + $0x20] sm:$0xff]
    %v774 = vld [vmem:[%s768 + $0x28] sm:$0xff]
    %v775 = vld [vmem:[%s768 + $0x30] sm:$0xff]
    %v776 = vld [vmem:[%s768 + $0x38] sm:$0xff]
    %v777 = vld [vmem:[%s768 + $0x40] sm:$0xff]
    %v778 = vld [vmem:[%s768 + $0x48] sm:$0xff]
    %v779 = vld [vmem:[%s768 + $0x50] sm:$0xff]
    %v780 = vld [vmem:[%s768 + $0x58] sm:$0xff]
    %v781 = vld [vmem:[%s768 + $0x60] sm:$0xff]
    %v782 = vld [vmem:[%s768 + $0x68] sm:$0xff]
    %v783 = vld [vmem:[%s768 + $0x70] sm:$0xff]
    %v784 = vld [vmem:[%s768 + $0x78] sm:$0xff]
    %v785 = vld [vmem:[%s768 + $0x80] sm:$0xff]
    %v786 = vld [vmem:[%s768 + $0x88] sm:$0xff]
    %v787 = vld [vmem:[%s768 + $0x90] sm:$0xff]
    %v788 = vld [vmem:[%s768 + $0x98] sm:$0xff]
    %v789 = vld [vmem:[%s768 + $0xa0] sm:$0xff]
    %v790 = vld [vmem:[%s768 + $0xa8] sm:$0xff]
    %v791 = vld [vmem:[%s768 + $0xb0] sm:$0xff]
    %v792 = vld [vmem:[%s768 + $0xb8] sm:$0xff]
    %v793 = vld [vmem:[%s768 + $0xc0] sm:$0xff]
    %v794 = vld [vmem:[%s768 + $0xc8] sm:$0xff]
    %v795 = vld [vmem:[%s768 + $0xd0] sm:$0xff]
    %v796 = vld [vmem:[%s768 + $0xd8] sm:$0xff]
    %v797 = vld [vmem:[%s768 + $0xe0] sm:$0xff]
    %v798 = vld [vmem:[%s768 + $0xe8] sm:$0xff]
    %v799 = vld [vmem:[%s768 + $0xf0] sm:$0xff]
    %v800 = vld [vmem:[%s768 + $0xf8] sm:$0xff]
    %s801 = scalar_lea.vmem [#allocation11], 4
    %v802 = vld [vmem:[%s801] sm:$0x3]
    %v803 = vld [vmem:[#allocation2] sm:$0xff]
    %v804 = vld [vmem:[#allocation2 + $0x8] sm:$0xff]
    %v805 = vpack.c.bf16 %v803, %v803
    %v806 = vpack.c.bf16 %v804, %v804
    %v808 = vperm.slane %v802, 0
    %v809 = vperm.slane %v802, 1
    %v844 = vunpack.c.l.b16 %v769
    %v845 = vunpack.c.h.b16 %v769
    %v846 = vunpack.c.l.b16 %v770
    %v847 = vunpack.c.h.b16 %v770
    %v848 = vunpack.c.l.b16 %v771
    %v849 = vunpack.c.h.b16 %v771
    %v850 = vunpack.c.l.b16 %v772
    %v851 = vunpack.c.h.b16 %v772
    %v852 = vunpack.c.l.b16 %v773
    %v853 = vunpack.c.h.b16 %v773
    %v854 = vunpack.c.l.b16 %v774
    %v855 = vunpack.c.h.b16 %v774
    %v856 = vunpack.c.l.b16 %v775
    %v857 = vunpack.c.h.b16 %v775
    %v858 = vunpack.c.l.b16 %v776
    %v859 = vunpack.c.h.b16 %v776
    %v860 = vunpack.c.l.b16 %v777
    %v861 = vunpack.c.h.b16 %v777
    %v862 = vunpack.c.l.b16 %v778
    %v863 = vunpack.c.h.b16 %v778
    %v864 = vunpack.c.l.b16 %v779
    %v865 = vunpack.c.h.b16 %v779
    %v866 = vunpack.c.l.b16 %v780
    %v867 = vunpack.c.h.b16 %v780
    %v868 = vunpack.c.l.b16 %v781
    %v869 = vunpack.c.h.b16 %v781
    %v870 = vunpack.c.l.b16 %v782
    %v871 = vunpack.c.h.b16 %v782
    %v872 = vunpack.c.l.b16 %v783
    %v873 = vunpack.c.h.b16 %v783
    %v874 = vunpack.c.l.b16 %v784
    %v875 = vunpack.c.h.b16 %v784
    %v876 = vunpack.c.l.b16 %v785
    %v877 = vunpack.c.h.b16 %v785
    %v878 = vunpack.c.l.b16 %v786
    %v879 = vunpack.c.h.b16 %v786
    %v880 = vunpack.c.l.b16 %v787
    %v881 = vunpack.c.h.b16 %v787
    %v882 = vunpack.c.l.b16 %v788
    %v883 = vunpack.c.h.b16 %v788
    %v884 = vunpack.c.l.b16 %v789
    %v885 = vunpack.c.h.b16 %v789
    %v886 = vunpack.c.l.b16 %v790
    %v887 = vunpack.c.h.b16 %v790
    %v888 = vunpack.c.l.b16 %v791
    %v889 = vunpack.c.h.b16 %v791
    %v890 = vunpack.c.l.b16 %v792
    %v891 = vunpack.c.h.b16 %v792
    %v892 = vunpack.c.l.b16 %v793
    %v893 = vunpack.c.h.b16 %v793
    %v894 = vunpack.c.l.b16 %v794
    %v895 = vunpack.c.h.b16 %v794
    %v896 = vunpack.c.l.b16 %v795
    %v897 = vunpack.c.h.b16 %v795
    %v898 = vunpack.c.l.b16 %v796
    %v899 = vunpack.c.h.b16 %v796
    %v900 = vunpack.c.l.b16 %v797
    %v901 = vunpack.c.h.b16 %v797
    %v902 = vunpack.c.l.b16 %v798
    %v903 = vunpack.c.h.b16 %v798
    %v904 = vunpack.c.l.b16 %v799
    %v905 = vunpack.c.h.b16 %v799
    %v906 = vunpack.c.l.b16 %v800
    %v907 = vunpack.c.h.b16 %v800
    %v908 = vpack.c.b16 %v846, %v844
    %v909 = vpack.c.b16 %v847, %v845
    %v910 = vpack.c.b16 %v850, %v848
    %v911 = vpack.c.b16 %v851, %v849
    %v912 = vpack.c.b16 %v854, %v852
    %v913 = vpack.c.b16 %v855, %v853
    %v914 = vpack.c.b16 %v858, %v856
    %v915 = vpack.c.b16 %v859, %v857
    %v916 = vpack.c.b16 %v862, %v860
    %v917 = vpack.c.b16 %v863, %v861
    %v918 = vpack.c.b16 %v866, %v864
    %v919 = vpack.c.b16 %v867, %v865
    %v920 = vpack.c.b16 %v870, %v868
    %v921 = vpack.c.b16 %v871, %v869
    %v922 = vpack.c.b16 %v874, %v872
    %v923 = vpack.c.b16 %v875, %v873
    %v924 = vpack.c.b16 %v878, %v876
    %v925 = vpack.c.b16 %v879, %v877
    %v926 = vpack.c.b16 %v882, %v880
    %v927 = vpack.c.b16 %v883, %v881
    %v928 = vpack.c.b16 %v886, %v884
    %v929 = vpack.c.b16 %v887, %v885
    %v930 = vpack.c.b16 %v890, %v888
    %v931 = vpack.c.b16 %v891, %v889
    %v932 = vpack.c.b16 %v894, %v892
    %v933 = vpack.c.b16 %v895, %v893
    %v934 = vpack.c.b16 %v898, %v896
    %v935 = vpack.c.b16 %v899, %v897
    %v936 = vpack.c.b16 %v902, %v900
    %v937 = vpack.c.b16 %v903, %v901
    %v938 = vpack.c.b16 %v906, %v904
    %v939 = vpack.c.b16 %v907, %v905
    %972 = vmatpush.bf16.msra.mxu0 %v922
    %973 = vmatpush.bf16.msra.mxu0 %v920
    %974 = vmatpush.bf16.msra.mxu0 %v918
    %975 = vmatpush.bf16.msra.mxu0 %v916
    %976 = vmatpush.bf16.msra.mxu0 %v914
    %977 = vmatpush.bf16.msra.mxu0 %v912
    %978 = vmatpush.bf16.msra.mxu0 %v910
    %979 = vmatpush.bf16.msra.mxu0 %v908
    %980 = vmatmul.bf16.gmra.mxu0 %v805
    %v981 = vpop.f32.mrf.mxu0
    %v982 = vadd.f32 %v808, %v981
    %v983 = vpop.f32.mrf.mxu0
    %984 = vdwg.mxu0
    %985 = vmatpush.bf16.msra.mxu0 %v938
    %986 = vmatpush.bf16.msra.mxu0 %v936
    %987 = vmatpush.bf16.msra.mxu0 %v934
    %988 = vmatpush.bf16.msra.mxu0 %v932
    %989 = vmatpush.bf16.msra.mxu0 %v930
    %990 = vmatpush.bf16.msra.mxu0 %v928
    %991 = vmatpush.bf16.msra.mxu0 %v926
    %992 = vmatpush.bf16.msra.mxu0 %v924
    %993 = vmatmul.bf16.gmra.mxu0 %v806
    %v994 = vpop.f32.mrf.mxu0
    %v995 = vadd.f32 %v982, %v994
    %v996 = vpop.f32.mrf.mxu0
    %997 = vdwg.mxu0
    %998 = vmatpush.bf16.msra.mxu0 %v923
    %999 = vmatpush.bf16.msra.mxu0 %v921
    %1000 = vmatpush.bf16.msra.mxu0 %v919
    %1001 = vmatpush.bf16.msra.mxu0 %v917
    %1002 = vmatpush.bf16.msra.mxu0 %v915
    %1003 = vmatpush.bf16.msra.mxu0 %v913
    %1004 = vmatpush.bf16.msra.mxu0 %v911
    %1005 = vmatpush.bf16.msra.mxu0 %v909
    %1006 = vmatmul.bf16.gmra.mxu0 %v805
    %v1007 = vpop.f32.mrf.mxu0
    %v1008 = vadd.f32 %v809, %v1007
    %v1009 = vpop.f32.mrf.mxu0
    %1010 = vdwg.mxu0
    %1011 = vmatpush.bf16.msra.mxu0 %v939
    %1012 = vmatpush.bf16.msra.mxu0 %v937
    %1013 = vmatpush.bf16.msra.mxu0 %v935
    %1014 = vmatpush.bf16.msra.mxu0 %v933
    %1015 = vmatpush.bf16.msra.mxu0 %v931
    %1016 = vmatpush.bf16.msra.mxu0 %v929
    %1017 = vmatpush.bf16.msra.mxu0 %v927
    %1018 = vmatpush.bf16.msra.mxu0 %v925
    %1019 = vmatmul.bf16.gmra.mxu0 %v806
    %v1020 = vpop.f32.mrf.mxu0
    %v1021 = vadd.f32 %v1008, %v1020
    %v1022 = vpop.f32.mrf.mxu0
    %1023 = vdwg.mxu0
    %v1024 = vmax.f32 %v995, 0.0
    %v1025 = vmax.f32 %v1021, 0.0
    %1026 = vst [vmem:[#allocation2] sm:$0xff] %v1024
    %1027 = vst [vmem:[#allocation2 + $0x8] sm:$0xff] %v1025
    %v1028 = vld [vmem:[#allocation2] sm:$0xff]
    %v1029 = vld [vmem:[#allocation2 + $0x8] sm:$0xff]
    %v1030 = vpack.c.bf16 %v1028, %v1028
    %v1031 = vpack.c.bf16 %v1029, %v1029
    %v1032 = vld [vmem:[#allocation12] sm:$0xf]
    %v1033 = vld [vmem:[#allocation12 + $0x4] sm:$0xf]
    %v1034 = vld [vmem:[#allocation12 + $0x8] sm:$0xf]
    %v1035 = vld [vmem:[#allocation12 + $0xc] sm:$0xf]
    %v1036 = vld [vmem:[#allocation12 + $0x10] sm:$0xf]
    %v1037 = vld [vmem:[#allocation12 + $0x14] sm:$0xf]
    %v1038 = vld [vmem:[#allocation12 + $0x18] sm:$0xf]
    %v1039 = vld [vmem:[#allocation12 + $0x1c] sm:$0xf]
    %v1040 = vld [vmem:[#allocation12 + $0x20] sm:$0xf]
    %v1041 = vld [vmem:[#allocation12 + $0x24] sm:$0xf]
    %v1042 = vld [vmem:[#allocation12 + $0x28] sm:$0xf]
    %v1043 = vld [vmem:[#allocation12 + $0x2c] sm:$0xf]
    %v1044 = vld [vmem:[#allocation12 + $0x30] sm:$0xf]
    %v1045 = vld [vmem:[#allocation12 + $0x34] sm:$0xf]
    %v1046 = vld [vmem:[#allocation12 + $0x38] sm:$0xf]
    %v1047 = vld [vmem:[#allocation12 + $0x3c] sm:$0xf]
    %v1048 = vld [vmem:[#allocation12 + $0x40] sm:$0xf]
    %v1049 = vld [vmem:[#allocation12 + $0x44] sm:$0xf]
    %v1050 = vld [vmem:[#allocation12 + $0x48] sm:$0xf]
    %v1051 = vld [vmem:[#allocation12 + $0x4c] sm:$0xf]
    %v1052 = vld [vmem:[#allocation12 + $0x50] sm:$0xf]
    %v1053 = vld [vmem:[#allocation12 + $0x54] sm:$0xf]
    %v1054 = vld [vmem:[#allocation12 + $0x58] sm:$0xf]
    %v1055 = vld [vmem:[#allocation12 + $0x5c] sm:$0xf]
    %v1056 = vld [vmem:[#allocation12 + $0x60] sm:$0xf]
    %v1057 = vld [vmem:[#allocation12 + $0x64] sm:$0xf]
    %v1058 = vld [vmem:[#allocation12 + $0x68] sm:$0xf]
    %v1059 = vld [vmem:[#allocation12 + $0x6c] sm:$0xf]
    %v1060 = vld [vmem:[#allocation12 + $0x70] sm:$0xf]
    %v1061 = vld [vmem:[#allocation12 + $0x74] sm:$0xf]
    %v1062 = vld [vmem:[#allocation12 + $0x78] sm:$0xf]
    %v1063 = vld [vmem:[#allocation12 + $0x7c] sm:$0xf]
    %v1064 = vld [vmem:[%s6] sm:$0x1]
    %v1066 = vperm.slane %v1064, 0
    %v1100 = vunpack.c.l.b16 %v1032
    %v1101 = vunpack.c.l.b16 %v1033
    %v1102 = vunpack.c.l.b16 %v1034
    %v1103 = vunpack.c.l.b16 %v1035
    %v1104 = vunpack.c.l.b16 %v1036
    %v1105 = vunpack.c.l.b16 %v1037
    %v1106 = vunpack.c.l.b16 %v1038
    %v1107 = vunpack.c.l.b16 %v1039
    %v1108 = vunpack.c.l.b16 %v1040
    %v1109 = vunpack.c.l.b16 %v1041
    %v1110 = vunpack.c.l.b16 %v1042
    %v1111 = vunpack.c.l.b16 %v1043
    %v1112 = vunpack.c.l.b16 %v1044
    %v1113 = vunpack.c.l.b16 %v1045
    %v1114 = vunpack.c.l.b16 %v1046
    %v1115 = vunpack.c.l.b16 %v1047
    %v1116 = vunpack.c.l.b16 %v1048
    %v1117 = vunpack.c.l.b16 %v1049
    %v1118 = vunpack.c.l.b16 %v1050
    %v1119 = vunpack.c.l.b16 %v1051
    %v1120 = vunpack.c.l.b16 %v1052
    %v1121 = vunpack.c.l.b16 %v1053
    %v1122 = vunpack.c.l.b16 %v1054
    %v1123 = vunpack.c.l.b16 %v1055
    %v1124 = vunpack.c.l.b16 %v1056
    %v1125 = vunpack.c.l.b16 %v1057
    %v1126 = vunpack.c.l.b16 %v1058
    %v1127 = vunpack.c.l.b16 %v1059
    %v1128 = vunpack.c.l.b16 %v1060
    %v1129 = vunpack.c.l.b16 %v1061
    %v1130 = vunpack.c.l.b16 %v1062
    %v1131 = vunpack.c.l.b16 %v1063
    %v1132 = vpack.c.b16 %v1101, %v1100
    %v1133 = vpack.c.b16 %v1103, %v1102
    %v1134 = vpack.c.b16 %v1105, %v1104
    %v1135 = vpack.c.b16 %v1107, %v1106
    %v1136 = vpack.c.b16 %v1109, %v1108
    %v1137 = vpack.c.b16 %v1111, %v1110
    %v1138 = vpack.c.b16 %v1113, %v1112
    %v1139 = vpack.c.b16 %v1115, %v1114
    %v1140 = vpack.c.b16 %v1117, %v1116
    %v1141 = vpack.c.b16 %v1119, %v1118
    %v1142 = vpack.c.b16 %v1121, %v1120
    %v1143 = vpack.c.b16 %v1123, %v1122
    %v1144 = vpack.c.b16 %v1125, %v1124
    %v1145 = vpack.c.b16 %v1127, %v1126
    %v1146 = vpack.c.b16 %v1129, %v1128
    %v1147 = vpack.c.b16 %v1131, %v1130
    %1164 = vmatpush.bf16.msra.mxu0 %v1139
    %1165 = vmatpush.bf16.msra.mxu0 %v1138
    %1166 = vmatpush.bf16.msra.mxu0 %v1137
    %1167 = vmatpush.bf16.msra.mxu0 %v1136
    %1168 = vmatpush.bf16.msra.mxu0 %v1135
    %1169 = vmatpush.bf16.msra.mxu0 %v1134
    %1170 = vmatpush.bf16.msra.mxu0 %v1133
    %1171 = vmatpush.bf16.msra.mxu0 %v1132
    %1172 = vmatmul.bf16.gmra.mxu0 %v1030
    %v1173 = vpop.f32.mrf.mxu0
    %v1174 = vadd.f32 %v1066, %v1173
    %v1175 = vpop.f32.mrf.mxu0
    %1176 = vdwg.mxu0
    %1177 = vmatpush.bf16.msra.mxu0 %v1147
    %1178 = vmatpush.bf16.msra.mxu0 %v1146
    %1179 = vmatpush.bf16.msra.mxu0 %v1145
    %1180 = vmatpush.bf16.msra.mxu0 %v1144
    %1181 = vmatpush.bf16.msra.mxu0 %v1143
    %1182 = vmatpush.bf16.msra.mxu0 %v1142
    %1183 = vmatpush.bf16.msra.mxu0 %v1141
    %1184 = vmatpush.bf16.msra.mxu0 %v1140
    %1185 = vmatmul.bf16.gmra.mxu0 %v1031
    %v1186 = vpop.f32.mrf.mxu0
    %v1187 = vadd.f32 %v1174, %v1186
    %v1188 = vpop.f32.mrf.mxu0
    %1189 = vdwg.mxu0
    %v1190 = vxor.u32 %v1187, 2147483648
    %v1191 = vmul.f32 %v1190, 1.442695
    %v1192 = vpow.pop %v1191
    %v1193 = vadd.f32 %v1192, 1.0
    %v1194 = vrcp.pop %v1193
    %v1195 = vmul.f32 %v1193, %v1194
    %v1196 = vsub.f32 1.0, %v1195
    %v1197 = vmul.f32 %v1194, %v1196
    %v1198 = vadd.f32 %v1194, %v1197
    %vm1199 = vweird.f32 %v1193
    %vm1200 = vweird.f32 %v1194
    %vm1201 = vmor %vm1199, %vm1200
    %v1202 = vsel %vm1201, %v1194, %v1198
    %v1203 = vand.u32 2147483647, %v1193
    %vm1204 = vcmp.eq.f32.partialorder %v1203, 8.507059e+37
    %v1205 = vand.u32 %v1193, 2147483648
    %v1206 = vor.u32 1.1754944e-38, %v1205
    %v1207 = vsel %vm1204, %v1206, %v1202
    %v1208 = vmul.f32 1.0, %v1207
    %1209 = vst [vmem:[#allocation14] sm:$0xff] %v1208
    // Predicated region
    $region54: #{tpu_custom_call.1} parent=1 // pred_check
      _
    $region55: #{tpu_custom_call.1} parent=1 // pred_check_branch
      %1211 = sbr.rel (0) target = $region57
    $region56: #{tpu_custom_call.1} parent=1 // pred_region
      %1213 = vsyncadd [#allocation5], 0
      %s1215 = sshll.u32 [#allocation14], 4
      %s1216 = int_to_ptr.vmem [resolvable:$true] %s1215
      %s1217 = sshll.u32 %s7, 4
      %s1218 = int_to_ptr.hbm [resolvable:$true] %s1217
      %1220 = dma.vmem_to_hbm [thread:$0]  %s1216, 128, %s1218, [#allocation5]
    $region57: #{tpu_custom_call.1} parent=1 // pred_fallthru
      _
    // Predicated region
    $region58: #{tpu_custom_call.1} parent=1 // pred_check
      _
    $region59: #{tpu_custom_call.1} parent=1 // pred_check_branch
      %1222 = sbr.rel (0) target = $region61
    $region60: #{tpu_custom_call.1} parent=1 // pred_region
      %1224 = dma.done [#allocation5], 128
    $region61: #{tpu_custom_call.1} parent=1 // pred_fallthru
      _
    %1225 = vsyncpa [#allocation4], 1
    %1226 = vsyncpa [#allocation7], 1
    %1227 = vsyncpa [#allocation10], 1
    %1228 = vsyncpa [#allocation13], 1
    %1229 = vsyncpa [#allocation5], 1

</llo_original>
